<compile_context>
chip_gen: v5e
topology: v5e:2x2
jax: 0.10.0
libtpu: 0.0.40
codegen_flags: <defaults>
</compile_context>

<pallas_src>
import jax
import jax.numpy as jnp
import numpy as np
from jax import lax
from jax.experimental import pallas as pl
from jax.experimental.pallas import tpu as pltpu


def _round_up(x: int, m: int) -> int:
    return ((x + m - 1) // m) * m


def _pick_batch_tile(batch, h_pad, c_pad, weight_bytes, max_tile):
    """Largest multiple-of-8 row tile that keeps double-buffered activation tiles plus
    the resident weights within a v7x-safe (~24 MiB) VMEM budget."""
    tb = min(max_tile, _round_up(batch, 8))
    tb = max(8, (tb // 8) * 8)
    budget = 24 << 20
    while tb > 8 and 2 * tb * (h_pad + 2 * c_pad) * 4 + 2 * weight_bytes > budget:
        tb = max(8, (tb // 2 // 8) * 8)
    return tb


# ----------------------------------------------------------------------------- kernel
def _make_hh_flow_kernel(n_sq: int, mm_dtype):
    """Kernel for one batch tile.

    Ref order (n_sq > 0):  h, zs, W0T, b0, WsqT, bsq, out
    Ref order (n_sq == 0): h, zs, W0T, b0, out
    W0T is [H_pad, C_pad] (pre-transposed), WsqT is [n_sq, C_pad, C_pad] (pre-transposed),
    biases are f32 [1, C_pad] / [n_sq, 1, C_pad].  All padding is zero, which is exactly
    semantics-preserving for both the Linear layers and the Householder update.
    """

    def hh_update(v, z):
        tb = v.shape[0]
        # One cross-lane reduction pass over [v*z | v*v] instead of two separate sums.
        prods = jnp.concatenate([v * z, v * v], axis=0)          # [2*TB, C]
        sums = jnp.sum(prods, axis=1, keepdims=True)             # [2*TB, 1]
        vz, vv = sums[:tb], sums[tb:]
        # Matches PyTorch: no epsilon on ||v||^2 (degenerate v -> NaN, as in reference).
        coef = (2.0 * vz) * pl.reciprocal(vv, approx=False)      # [TB, 1] on the EUP
        return z - coef * v

    def first_step(h_ref, zs_ref, w0_ref, b0_ref):
        z = zs_ref[...].astype(jnp.float32)
        v = jnp.dot(h_ref[...].astype(mm_dtype), w0_ref[...],
                    preferred_element_type=jnp.float32) + b0_ref[...]
        return v, hh_update(v, z)

    if n_sq > 0:
        def kernel(h_ref, zs_ref, w0_ref, b0_ref, wsq_ref, bsq_ref, out_ref):
            v, z = first_step(h_ref, zs_ref, w0_ref, b0_ref)

            def body(t, carry):
                v, z = carry
                w = wsq_ref[t]                                   # [C_pad, C_pad] mm_dtype
                b = bsq_ref[t]                                   # [1, C_pad]     f32
                v = jnp.dot(v.astype(mm_dtype), w,
                            preferred_element_type=jnp.float32) + b
                return v, hh_update(v, z)

            _, z = lax.fori_loop(0, n_sq, body, (v, z), unroll=n_sq <= 4)
            out_ref[...] = z.astype(out_ref.dtype)
    else:
        def kernel(h_ref, zs_ref, w0_ref, b0_ref, out_ref):
            _, z = first_step(h_ref, zs_ref, w0_ref, b0_ref)
            out_ref[...] = z.astype(out_ref.dtype)

    return kernel


# ----------------------------------------------------------------------------- wrapper
def householder_flow(h, zs, weights, biases, *, mm_dtype=jnp.bfloat16, batch_tile=256):
    """Pallas implementation of HouseholderFlow.forward (v2=True path).

    h:       [B, hidden_size]
    zs:      [B, code_size]
    weights: list of num_flow-1 matrices; weights[0] is [code_size, hidden_size],
             the rest are [code_size, code_size] (PyTorch nn.Linear convention).
    biases:  matching list, each [code_size].
    mm_dtype: MXU operand dtype (bf16 for v5e/v6e/v7x peak; accumulation stays f32).
    """
    num_steps = len(weights)
    if num_steps == 0:
        return zs

    B, H = h.shape
    _, C = zs.shape
    H_pad = _round_up(H, 128)
    C_pad = _round_up(C, 128)
    n_sq = num_steps - 1

    mm_bytes = jnp.dtype(mm_dtype).itemsize
    weight_bytes = (H_pad * C_pad + n_sq * C_pad * C_pad) * mm_bytes
    TB = _pick_batch_tile(B, H_pad, C_pad, weight_bytes, batch_tile)
    B_pad = _round_up(B, TB)

    # --- zero-pad activations to lane/sublane-aligned, grid-tileable shapes ----------
    h_p = jnp.zeros((B_pad, H_pad), h.dtype).at[:B, :H].set(h)
    zs_p = jnp.zeros((B_pad, C_pad), zs.dtype).at[:B, :C].set(zs)

    # --- first Linear: pre-transpose to [H_pad, C_pad], cast to MXU dtype ------------
    w0_t = jnp.zeros((H_pad, C_pad), mm_dtype).at[:H, :C].set(weights[0].T.astype(mm_dtype))
    b0 = jnp.zeros((1, C_pad), jnp.float32).at[0, :C].set(biases[0].astype(jnp.float32))

    operands = [h_p, zs_p, w0_t, b0]
    in_specs = [
        pl.BlockSpec((TB, C_pad) if k == 1 else (TB, H_pad), lambda i: (i, 0))
        for k in range(2)
    ] + [
        pl.BlockSpec((H_pad, C_pad), lambda i: (0, 0)),   # W0T: VMEM-resident
        pl.BlockSpec((1, C_pad), lambda i: (0, 0)),       # b0
    ]

    # --- remaining square Linears stacked into single refs ---------------------------
    if n_sq > 0:
        wsq = jnp.zeros((n_sq, C_pad, C_pad), mm_dtype)
        bsq = jnp.zeros((n_sq, 1, C_pad), jnp.float32)
        for t in range(n_sq):
            wsq = wsq.at[t, :C, :C].set(weights[t + 1].T.astype(mm_dtype))
            bsq = bsq.at[t, 0, :C].set(biases[t + 1].astype(jnp.float32))
        operands += [wsq, bsq]
        in_specs += [
            pl.BlockSpec((n_sq, C_pad, C_pad), lambda i: (0, 0, 0)),
            pl.BlockSpec((n_sq, 1, C_pad), lambda i: (0, 0, 0)),
        ]

    out_specs = pl.BlockSpec((TB, C_pad), lambda i: (i, 0))
    grid = (B_pad // TB,)

    # --- explicit VMEM budget (v7x has only 64 MiB physical) -------------------------
    act_bytes = 2 * TB * (H_pad + 2 * C_pad) * 4          # double-buffered h/zs/out tiles
    scratch_bytes = 8 * TB * C_pad * 4                    # in-kernel f32/bf16 temporaries
    vmem_limit = int(min(64 << 20,
                         max(32 << 20, 2 * (act_bytes + 2 * weight_bytes + scratch_bytes))))

    kernel = _make_hh_flow_kernel(n_sq, mm_dtype)

    out_p = pl.pallas_call(
        kernel,
        out_shape=jax.ShapeDtypeStruct((B_pad, C_pad), zs.dtype),
        grid=grid,
        in_specs=in_specs,
        out_specs=out_specs,
        input_output_aliases={1: 0},                      # zs is consumed, then overwritten
        compiler_params=pltpu.CompilerParams(
            dimension_semantics=("parallel",),            # megacore sharding on v7x
            vmem_limit_bytes=vmem_limit,
        ),
    )(*operands)

    return out_p[:B, :C]


def householder_flow_from_tuple(hidden_tuple, zs, weights, biases, **kw):
    """Glue for the v2=False path: hidden is a tuple of [1, B, *] arrays concatenated
    along the last axis, then the leading layer dim is dropped (wrapper-side jnp)."""
    h = jnp.concatenate(hidden_tuple, axis=2)[0]
    return householder_flow(h, zs, weights, biases, **kw)


# ----------------------------------------------------------------------------- reference
def householder_flow_ref(h, zs, weights, biases, mm_dtype=jnp.bfloat16):
    """Pure-jnp reference mirroring the kernel's bf16 MXU operands / f32 accumulation."""
    v = h.astype(jnp.float32)
    z = zs.astype(jnp.float32)
    for w, b in zip(weights, biases):
        v = jnp.dot(v.astype(mm_dtype), w.T.astype(mm_dtype),
                    preferred_element_type=jnp.float32) + b.astype(jnp.float32)
        vz = jnp.sum(v * z, axis=1, keepdims=True)
        vv = jnp.sum(v * v, axis=1, keepdims=True)
        z = z - 2.0 * v * vz / vv
    return z.astype(zs.dtype)


# ----------------------------------------------------------------------------- main
def _make_params(key, num_flow, hidden_size, code_size):
    """Deterministic init mimicking nn.Linear (uniform(-1/sqrt(fan_in), +)).
    Only fc_hhv[0 .. num_flow-2] are ever used by forward()."""
    weights, biases = [], []
    in_dims = [hidden_size] + [code_size] * (num_flow - 2)
    keys = jax.random.split(key, max(len(in_dims), 1))
    for t, in_dim in enumerate(in_dims):
        bound = 1.0 / np.sqrt(in_dim)
        kw, kb = jax.random.split(keys[t])
        weights.append(jax.random.uniform(kw, (code_size, in_dim), jnp.float32, -bound, bound))
        biases.append(jax.random.uniform(kb, (code_size,), jnp.float32, -bound, bound))
    return weights, biases


if __name__ == "__main__":
    key = jax.random.PRNGKey(0)

    flow_jit = jax.jit(householder_flow, static_argnames=("mm_dtype", "batch_tile"))

    # Case 1: module-sized toy problem (v2=True path): num_flow=3, hidden=32, code=16, B=2.
    k1, k2, kp1, kp2 = jax.random.split(key, 4)
    num_flow, hidden_size, code_size, batch = 3, 32, 16, 2
    h = jax.random.normal(k1, (batch, hidden_size), dtype=jnp.float32)
    zs = jax.random.normal(k2, (batch, code_size), dtype=jnp.float32)
    weights, biases = _make_params(kp1, num_flow, hidden_size, code_size)

    out = jax.block_until_ready(flow_jit(h, zs, weights, biases))
    ref = jax.block_until_ready(householder_flow_ref(h, zs, weights, biases))
    np.testing.assert_allclose(np.asarray(out), np.asarray(ref), rtol=1e-5, atol=1e-5)

    # Case 2: exercises multi-tile grid (grid=3), padding of a non-aligned batch,
    # and the fori_loop over stacked square weights (num_flow=4 -> 2 square steps).
    num_flow, hidden_size, code_size, batch = 4, 96, 48, 20
    kh, kz, kp = jax.random.split(kp2, 3)
    h2 = jax.random.normal(kh, (batch, hidden_size), dtype=jnp.float32)
    zs2 = jax.random.normal(kz, (batch, code_size), dtype=jnp.float32)
    weights2, biases2 = _make_params(kp, num_flow, hidden_size, code_size)

    out2 = jax.block_until_ready(flow_jit(h2, zs2, weights2, biases2, batch_tile=8))
    ref2 = jax.block_until_ready(householder_flow_ref(h2, zs2, weights2, biases2))
    np.testing.assert_allclose(np.asarray(out2), np.asarray(ref2), rtol=1e-5, atol=1e-5)

    print("KERNEL_OK")
</pallas_src>

<mosaic_0001>
module attributes {stable_mosaic.version = 11 : i64} {
  func.func @kernel(%arg0: i32, %arg1: memref<8x128xf32, #tpu.memory_space<vmem>>, %arg2: memref<8x128xf32, #tpu.memory_space<vmem>>, %arg3: memref<128x128xbf16, #tpu.memory_space<vmem>>, %arg4: memref<1x128xf32, #tpu.memory_space<vmem>>, %arg5: memref<1x128x128xbf16, #tpu.memory_space<vmem>>, %arg6: memref<1x1x128xf32, #tpu.memory_space<vmem>>, %arg7: memref<8x128xf32, #tpu.memory_space<vmem>>) attributes {dimension_semantics = [#tpu.dimension_semantics<parallel>], iteration_bounds = array<i64: 1>, scalar_prefetch = 0 : i64, scratch_operands = 0 : i64, tpu.core_type = #tpu.core_type<tc>, window_params = [{transform_indices = @transform_0, window_bounds = array<i64: 8, 128>}, {transform_indices = @transform_1, window_bounds = array<i64: 8, 128>}, {pipeline_mode = #tpu.pipeline_mode<synchronous>, transform_indices = @transform_2, window_bounds = array<i64: 128, 128>}, {pipeline_mode = #tpu.pipeline_mode<synchronous>, transform_indices = @transform_3, window_bounds = array<i64: 1, 128>}, {pipeline_mode = #tpu.pipeline_mode<synchronous>, transform_indices = @transform_4, window_bounds = array<i64: 1, 128, 128>}, {pipeline_mode = #tpu.pipeline_mode<synchronous>, transform_indices = @transform_5, window_bounds = array<i64: 1, 1, 128>}, {transform_indices = @transform_6, window_bounds = array<i64: 8, 128>}]} {
    %c0 = arith.constant 0 : index
    %c0_0 = arith.constant 0 : index
    %0 = vector.load %arg2[%c0, %c0_0] : memref<8x128xf32, #tpu.memory_space<vmem>>, vector<8x128xf32>
    %c0_1 = arith.constant 0 : index
    %c0_2 = arith.constant 0 : index
    %1 = vector.load %arg1[%c0_1, %c0_2] : memref<8x128xf32, #tpu.memory_space<vmem>>, vector<8x128xf32>
    %2 = arith.truncf %1 : vector<8x128xf32> to vector<8x128xbf16>
    %c0_3 = arith.constant 0 : index
    %c0_4 = arith.constant 0 : index
    %3 = vector.load %arg3[%c0_3, %c0_4] : memref<128x128xbf16, #tpu.memory_space<vmem>>, vector<128x128xbf16>
    %cst = arith.constant dense<0.000000e+00> : vector<8x128xf32>
    %4 = tpu.matmul %2, %3, %cst {dimension_numbers = #tpu.dot_dimension_numbers<[1], [0], [0], [1], [0, 0, 1, 1], [], []>} : vector<8x128xbf16>, vector<128x128xbf16>, vector<8x128xf32> -> vector<8x128xf32>
    %c0_5 = arith.constant 0 : index
    %c0_6 = arith.constant 0 : index
    %5 = vector.load %arg4[%c0_5, %c0_6] : memref<1x128xf32, #tpu.memory_space<vmem>>, vector<1x128xf32>
    %6 = vector.broadcast %5 : vector<1x128xf32> to vector<8x128xf32>
    %7 = arith.addf %4, %6 : vector<8x128xf32>
    %8 = arith.mulf %7, %0 : vector<8x128xf32>
    %9 = arith.mulf %7, %7 : vector<8x128xf32>
    %10 = tpu.concatenate %8, %9 in 0 : vector<8x128xf32>, vector<8x128xf32> -> vector<16x128xf32>
    %cst_7 = arith.constant dense<0.000000e+00> : vector<16xf32>
    %11 = vector.multi_reduction <add>, %10, %cst_7 [1] : vector<16x128xf32> to vector<16xf32>
    %12 = vector.shape_cast %11 : vector<16xf32> to vector<16x1xf32>
    %13 = vector.extract_strided_slice %12 {offsets = [0, 0], sizes = [8, 1], strides = [1, 1]} : vector<16x1xf32> to vector<8x1xf32>
    %14 = vector.extract_strided_slice %12 {offsets = [8, 0], sizes = [8, 1], strides = [1, 1]} : vector<16x1xf32> to vector<8x1xf32>
    %cst_8 = arith.constant 2.000000e+00 : f32
    %15 = vector.broadcast %cst_8 : f32 to vector<8x1xf32>
    %16 = arith.mulf %15, %13 : vector<8x1xf32>
    %17 = tpu.reciprocal %14 : vector<8x1xf32> -> vector<8x1xf32>
    %18 = arith.mulf %16, %17 : vector<8x1xf32>
    %19 = vector.broadcast %18 : vector<8x1xf32> to vector<8x128xf32>
    %20 = arith.mulf %19, %7 : vector<8x128xf32>
    %21 = arith.subf %0, %20 : vector<8x128xf32>
    %c0_i32 = arith.constant 0 : i32
    %22 = arith.index_cast %c0_i32 : i32 to index
    %c0_9 = arith.constant 0 : index
    %c0_10 = arith.constant 0 : index
    %23 = vector.load %arg5[%22, %c0_9, %c0_10] : memref<1x128x128xbf16, #tpu.memory_space<vmem>>, vector<1x128x128xbf16>
    %24 = vector.shape_cast %23 : vector<1x128x128xbf16> to vector<128x128xbf16>
    %25 = arith.index_cast %c0_i32 : i32 to index
    %c0_11 = arith.constant 0 : index
    %c0_12 = arith.constant 0 : index
    %26 = vector.load %arg6[%25, %c0_11, %c0_12] : memref<1x1x128xf32, #tpu.memory_space<vmem>>, vector<1x1x128xf32>
    %27 = vector.shape_cast %26 : vector<1x1x128xf32> to vector<1x128xf32>
    %28 = arith.truncf %7 : vector<8x128xf32> to vector<8x128xbf16>
    %cst_13 = arith.constant dense<0.000000e+00> : vector<8x128xf32>
    %29 = tpu.matmul %28, %24, %cst_13 {dimension_numbers = #tpu.dot_dimension_numbers<[1], [0], [0], [1], [0, 0, 1, 1], [], []>} : vector<8x128xbf16>, vector<128x128xbf16>, vector<8x128xf32> -> vector<8x128xf32>
    %30 = vector.broadcast %27 : vector<1x128xf32> to vector<8x128xf32>
    %31 = arith.addf %29, %30 : vector<8x128xf32>
    %32 = arith.mulf %31, %21 : vector<8x128xf32>
    %33 = arith.mulf %31, %31 : vector<8x128xf32>
    %34 = tpu.concatenate %32, %33 in 0 : vector<8x128xf32>, vector<8x128xf32> -> vector<16x128xf32>
    %cst_14 = arith.constant dense<0.000000e+00> : vector<16xf32>
    %35 = vector.multi_reduction <add>, %34, %cst_14 [1] : vector<16x128xf32> to vector<16xf32>
    %36 = vector.shape_cast %35 : vector<16xf32> to vector<16x1xf32>
    %37 = vector.extract_strided_slice %36 {offsets = [0, 0], sizes = [8, 1], strides = [1, 1]} : vector<16x1xf32> to vector<8x1xf32>
    %38 = vector.extract_strided_slice %36 {offsets = [8, 0], sizes = [8, 1], strides = [1, 1]} : vector<16x1xf32> to vector<8x1xf32>
    %cst_15 = arith.constant 2.000000e+00 : f32
    %39 = vector.broadcast %cst_15 : f32 to vector<8x1xf32>
    %40 = arith.mulf %39, %37 : vector<8x1xf32>
    %41 = tpu.reciprocal %38 : vector<8x1xf32> -> vector<8x1xf32>
    %42 = arith.mulf %40, %41 : vector<8x1xf32>
    %43 = vector.broadcast %42 : vector<8x1xf32> to vector<8x128xf32>
    %44 = arith.mulf %43, %31 : vector<8x128xf32>
    %45 = arith.subf %21, %44 : vector<8x128xf32>
    %c1_i32 = arith.constant 1 : i32
    %c0_16 = arith.constant 0 : index
    %c0_17 = arith.constant 0 : index
    %46 = vector.load %arg7[%c0_16, %c0_17] : memref<8x128xf32, #tpu.memory_space<vmem>>, vector<8x128xf32>
    tpu.vector_store %arg7[%c0_16, %c0_17], %45 {strides = array<i32>} : memref<8x128xf32, #tpu.memory_space<vmem>>, vector<8x128xf32>,
    return
  }
  func.func @transform_0(%arg0: i32) -> (i32, i32) {
    %c0_i32 = arith.constant 0 : i32
    %c0_i32_0 = arith.constant 0 : i32
    return %arg0, %c0_i32 : i32, i32
  }
  func.func @transform_1(%arg0: i32) -> (i32, i32) {
    %c0_i32 = arith.constant 0 : i32
    %c0_i32_0 = arith.constant 0 : i32
    return %arg0, %c0_i32 : i32, i32
  }
  func.func @transform_2(%arg0: i32) -> (i32, i32) {
    %c0_i32 = arith.constant 0 : i32
    %c0_i32_0 = arith.constant 0 : i32
    %c0_i32_1 = arith.constant 0 : i32
    return %c0_i32, %c0_i32_0 : i32, i32
  }
  func.func @transform_3(%arg0: i32) -> (i32, i32) {
    %c0_i32 = arith.constant 0 : i32
    %c0_i32_0 = arith.constant 0 : i32
    %c0_i32_1 = arith.constant 0 : i32
    return %c0_i32, %c0_i32_0 : i32, i32
  }
  func.func @transform_4(%arg0: i32) -> (i32, i32, i32) {
    %c0_i32 = arith.constant 0 : i32
    %c0_i32_0 = arith.constant 0 : i32
    %c0_i32_1 = arith.constant 0 : i32
    %c0_i32_2 = arith.constant 0 : i32
    return %c0_i32, %c0_i32_0, %c0_i32_1 : i32, i32, i32
  }
  func.func @transform_5(%arg0: i32) -> (i32, i32, i32) {
    %c0_i32 = arith.constant 0 : i32
    %c0_i32_0 = arith.constant 0 : i32
    %c0_i32_1 = arith.constant 0 : i32
    %c0_i32_2 = arith.constant 0 : i32
    return %c0_i32, %c0_i32_0, %c0_i32_1 : i32, i32, i32
  }
  func.func @transform_6(%arg0: i32) -> (i32, i32) {
    %c0_i32 = arith.constant 0 : i32
    %c0_i32_0 = arith.constant 0 : i32
    return %arg0, %c0_i32 : i32, i32
  }
}

</mosaic_0001>

<llo_original>
// kernel: householder_flow.1
$region0: #{householder_flow.1}
  #allocation0 [shape = 'u32[]', space=smem, size = 0x4, offset = 0x4, fixed_abs, tag = 'smem constant byte address 0x4 - core index']
  #allocation1 [shape = 'u32[72,128]{1,0:T(1,128)}', space=vmem, size = 0x9000, scoped, tag = 'internal scratch']
  %s0 = inlined_call_operand.vmem [shape: f32[8,128], index: 0, kind: input, shape index: {}]
  %s1 = inlined_call_operand.vmem [shape: f32[8,128], index: 1, kind: input, shape index: {}, may-alias: {1,6}]
  %s2 = inlined_call_operand.vmem [shape: bf16[128,128], index: 2, kind: input, shape index: {}]
  %s3 = inlined_call_operand.vmem [shape: f32[1,128], index: 3, kind: input, shape index: {}]
  %s4 = inlined_call_operand.vmem [shape: bf16[1,128,128], index: 4, kind: input, shape index: {}]
  %s5 = inlined_call_operand.vmem [shape: f32[1,1,128], index: 5, kind: input, shape index: {}]
  %s6 = inlined_call_operand.vmem [shape: f32[8,128], index: 6, kind: output, shape index: {}, may-alias: {1,6}]
  %s7 = sld [smem:[#allocation0]]
  $region34: #{householder_flow.1} parent=0
    _
  %s9 = ssub.s32 1, %s7
  %s10 = scalar_select 0, %s9, %s7
  // Predicated region
  $region2: #{householder_flow.1} parent=0 // pred_check
    _
  $region3: #{householder_flow.1} parent=0 // pred_check_branch
    %12 = sbr.rel (0) target = $region5
  $region4: #{householder_flow.1} parent=0 // pred_region
    _
  $region5: #{householder_flow.1} parent=0 // pred_fallthru
    _
  // Predicated region
  $region6: #{householder_flow.1} parent=0 // pred_check
    _
  $region7: #{householder_flow.1} parent=0 // pred_check_branch
    %14 = sbr.rel (0) target = $region9
  $region8: #{householder_flow.1} parent=0 // pred_region
    _
  $region9: #{householder_flow.1} parent=0 // pred_fallthru
    _
  // Predicated region
  $region10: #{householder_flow.1} parent=0 // pred_check
    _
  $region11: #{householder_flow.1} parent=0 // pred_check_branch
    %16 = sbr.rel (0) target = $region13
  $region12: #{householder_flow.1} parent=0 // pred_region
    _
  $region13: #{householder_flow.1} parent=0 // pred_fallthru
    _
  // Predicated region
  $region14: #{householder_flow.1} parent=0 // pred_check
    _
  $region15: #{householder_flow.1} parent=0 // pred_check_branch
    %18 = sbr.rel (0) target = $region17
  $region16: #{householder_flow.1} parent=0 // pred_region
    _
  $region17: #{householder_flow.1} parent=0 // pred_fallthru
    _
  // Predicated region
  $region18: #{householder_flow.1} parent=0 // pred_check
    _
  $region19: #{householder_flow.1} parent=0 // pred_check_branch
    %20 = sbr.rel (0) target = $region21
  $region20: #{householder_flow.1} parent=0 // pred_region
    _
  $region21: #{householder_flow.1} parent=0 // pred_fallthru
    _
  // Predicated region
  $region22: #{householder_flow.1} parent=0 // pred_check
    _
  $region23: #{householder_flow.1} parent=0 // pred_check_branch
    %22 = sbr.rel (0) target = $region25
  $region24: #{householder_flow.1} parent=0 // pred_region
    _
  $region25: #{householder_flow.1} parent=0 // pred_fallthru
    _
  %v23 = vld [vmem:[%s1] sm:$0xff]
  %v24 = vld [vmem:[%s0] sm:$0xff]
  %v25 = vpack.c.bf16 %v24, %v24
  %v26 = vld [vmem:[%s2] sm:$0xf]
  %v27 = vld [vmem:[%s2 + $0x4] sm:$0xf]
  %v28 = vld [vmem:[%s2 + $0x8] sm:$0xf]
  %v29 = vld [vmem:[%s2 + $0xc] sm:$0xf]
  %v30 = vld [vmem:[%s2 + $0x10] sm:$0xf]
  %v31 = vld [vmem:[%s2 + $0x14] sm:$0xf]
  %v32 = vld [vmem:[%s2 + $0x18] sm:$0xf]
  %v33 = vld [vmem:[%s2 + $0x1c] sm:$0xf]
  %v34 = vld [vmem:[%s2 + $0x20] sm:$0xf]
  %v35 = vld [vmem:[%s2 + $0x24] sm:$0xf]
  %v36 = vld [vmem:[%s2 + $0x28] sm:$0xf]
  %v37 = vld [vmem:[%s2 + $0x2c] sm:$0xf]
  %v38 = vld [vmem:[%s2 + $0x30] sm:$0xf]
  %v39 = vld [vmem:[%s2 + $0x34] sm:$0xf]
  %v40 = vld [vmem:[%s2 + $0x38] sm:$0xf]
  %v41 = vld [vmem:[%s2 + $0x3c] sm:$0xf]
  %v42 = vld [vmem:[%s3] sm:$0x1]
  %v44 = vperm.slane %v42, 0
  %v62 = vunpack.c.l.b16 %v26
  %v63 = vunpack.c.l.b16 %v27
  %v64 = vunpack.c.l.b16 %v28
  %v65 = vunpack.c.l.b16 %v29
  %v66 = vunpack.c.l.b16 %v30
  %v67 = vunpack.c.l.b16 %v31
  %v68 = vunpack.c.l.b16 %v32
  %v69 = vunpack.c.l.b16 %v33
  %v70 = vunpack.c.l.b16 %v34
  %v71 = vunpack.c.l.b16 %v35
  %v72 = vunpack.c.l.b16 %v36
  %v73 = vunpack.c.l.b16 %v37
  %v74 = vunpack.c.l.b16 %v38
  %v75 = vunpack.c.l.b16 %v39
  %v76 = vunpack.c.l.b16 %v40
  %v77 = vunpack.c.l.b16 %v41
  %v78 = vpack.c.b16 %v63, %v62
  %v79 = vpack.c.b16 %v65, %v64
  %v80 = vpack.c.b16 %v67, %v66
  %v81 = vpack.c.b16 %v69, %v68
  %v82 = vpack.c.b16 %v71, %v70
  %v83 = vpack.c.b16 %v73, %v72
  %v84 = vpack.c.b16 %v75, %v74
  %v85 = vpack.c.b16 %v77, %v76
  %94 = vmatpush.bf16.msra.mxu0 %v85
  %95 = vmatpush.bf16.msra.mxu0 %v84
  %96 = vmatpush.bf16.msra.mxu0 %v83
  %97 = vmatpush.bf16.msra.mxu0 %v82
  %98 = vmatpush.bf16.msra.mxu0 %v81
  %99 = vmatpush.bf16.msra.mxu0 %v80
  %100 = vmatpush.bf16.msra.mxu0 %v79
  %101 = vmatpush.bf16.msra.mxu0 %v78
  %102 = vmatmul.bf16.gmra.mxu0 %v25
  %v103 = vpop.f32.mrf.mxu0
  %v104 = vadd.f32 %v44, %v103
  %v105 = vpop.f32.mrf.mxu0
  %106 = vdwg.mxu0
  %v107 = vmul.f32 %v104, %v23
  %v108 = vmul.f32 %v104, %v104
  %109 = vadd.xlane.f32.xlu0 %v107
  %v110 = vpop.xlane.xlu0 %109
  %111 = vadd.xlane.f32.xlu0 %v108
  %v112 = vpop.xlane.xlu0 %111
  %v113 = vmul.f32 %v110, 2.0
  %v114 = vrcp.pop %v112
  %v115 = vmul.f32 %v112, %v114
  %v116 = vsub.f32 1.0, %v115
  %v117 = vmul.f32 %v114, %v116
  %v118 = vadd.f32 %v114, %v117
  %vm119 = vweird.f32 %v112
  %vm120 = vweird.f32 %v114
  %vm121 = vmor %vm119, %vm120
  %v122 = vsel %vm121, %v114, %v118
  %v123 = vand.u32 2147483647, %v112
  %vm124 = vcmp.eq.f32.partialorder %v123, 8.507059e+37
  %v125 = vand.u32 %v112, 2147483648
  %v126 = vor.u32 1.1754944e-38, %v125
  %v127 = vsel %vm124, %v126, %v122
  %v128 = vmul.f32 %v113, %v127
  %v129 = vmul.f32 %v128, %v104
  %v130 = vsub.f32 %v23, %v129
  %v131 = vld [vmem:[%s4] sm:$0xf]
  %v132 = vld [vmem:[%s4 + $0x4] sm:$0xf]
  %v133 = vld [vmem:[%s4 + $0x8] sm:$0xf]
  %v134 = vld [vmem:[%s4 + $0xc] sm:$0xf]
  %v135 = vld [vmem:[%s4 + $0x10] sm:$0xf]
  %v136 = vld [vmem:[%s4 + $0x14] sm:$0xf]
  %v137 = vld [vmem:[%s4 + $0x18] sm:$0xf]
  %v138 = vld [vmem:[%s4 + $0x1c] sm:$0xf]
  %v139 = vld [vmem:[%s4 + $0x20] sm:$0xf]
  %v140 = vld [vmem:[%s4 + $0x24] sm:$0xf]
  %v141 = vld [vmem:[%s4 + $0x28] sm:$0xf]
  %v142 = vld [vmem:[%s4 + $0x2c] sm:$0xf]
  %v143 = vld [vmem:[%s4 + $0x30] sm:$0xf]
  %v144 = vld [vmem:[%s4 + $0x34] sm:$0xf]
  %v145 = vld [vmem:[%s4 + $0x38] sm:$0xf]
  %v146 = vld [vmem:[%s4 + $0x3c] sm:$0xf]
  %v147 = vld [vmem:[%s5] sm:$0x1]
  %v148 = vpack.c.bf16 %v104, %v104
  %v150 = vperm.slane %v147, 0
  %v168 = vunpack.c.l.b16 %v131
  %v169 = vunpack.c.l.b16 %v132
  %v170 = vunpack.c.l.b16 %v133
  %v171 = vunpack.c.l.b16 %v134
  %v172 = vunpack.c.l.b16 %v135
  %v173 = vunpack.c.l.b16 %v136
  %v174 = vunpack.c.l.b16 %v137
  %v175 = vunpack.c.l.b16 %v138
  %v176 = vunpack.c.l.b16 %v139
  %v177 = vunpack.c.l.b16 %v140
  %v178 = vunpack.c.l.b16 %v141
  %v179 = vunpack.c.l.b16 %v142
  %v180 = vunpack.c.l.b16 %v143
  %v181 = vunpack.c.l.b16 %v144
  %v182 = vunpack.c.l.b16 %v145
  %v183 = vunpack.c.l.b16 %v146
  %v184 = vpack.c.b16 %v169, %v168
  %v185 = vpack.c.b16 %v171, %v170
  %v186 = vpack.c.b16 %v173, %v172
  %v187 = vpack.c.b16 %v175, %v174
  %v188 = vpack.c.b16 %v177, %v176
  %v189 = vpack.c.b16 %v179, %v178
  %v190 = vpack.c.b16 %v181, %v180
  %v191 = vpack.c.b16 %v183, %v182
  %200 = vmatpush.bf16.msra.mxu0 %v191
  %201 = vmatpush.bf16.msra.mxu0 %v190
  %202 = vmatpush.bf16.msra.mxu0 %v189
  %203 = vmatpush.bf16.msra.mxu0 %v188
  %204 = vmatpush.bf16.msra.mxu0 %v187
  %205 = vmatpush.bf16.msra.mxu0 %v186
  %206 = vmatpush.bf16.msra.mxu0 %v185
  %207 = vmatpush.bf16.msra.mxu0 %v184
  %208 = vmatmul.bf16.gmra.mxu0 %v148
  %v209 = vpop.f32.mrf.mxu0
  %v210 = vadd.f32 %v150, %v209
  %v211 = vpop.f32.mrf.mxu0
  %212 = vdwg.mxu0
  %v213 = vmul.f32 %v210, %v130
  %v214 = vmul.f32 %v210, %v210
  %215 = vadd.xlane.f32.xlu0 %v213
  %v216 = vpop.xlane.xlu0 %215
  %217 = vadd.xlane.f32.xlu0 %v214
  %v218 = vpop.xlane.xlu0 %217
  %v219 = vmul.f32 %v216, 2.0
  %v220 = vrcp.pop %v218
  %v221 = vmul.f32 %v218, %v220
  %v222 = vsub.f32 1.0, %v221
  %v223 = vmul.f32 %v220, %v222
  %v224 = vadd.f32 %v220, %v223
  %vm225 = vweird.f32 %v218
  %vm226 = vweird.f32 %v220
  %vm227 = vmor %vm225, %vm226
  %v228 = vsel %vm227, %v220, %v224
  %v229 = vand.u32 2147483647, %v218
  %vm230 = vcmp.eq.f32.partialorder %v229, 8.507059e+37
  %v231 = vand.u32 %v218, 2147483648
  %v232 = vor.u32 1.1754944e-38, %v231
  %v233 = vsel %vm230, %v232, %v228
  %v234 = vmul.f32 %v219, %v233
  %v235 = vmul.f32 %v234, %v210
  %v236 = vsub.f32 %v130, %v235
  %237 = vst [vmem:[%s6] sm:$0xff] %v236
  // Predicated region
  $region26: #{householder_flow.1} parent=0 // pred_check
    _
  $region27: #{householder_flow.1} parent=0 // pred_check_branch
    %239 = sbr.rel (0) target = $region29
  $region28: #{householder_flow.1} parent=0 // pred_region
    _
  $region29: #{householder_flow.1} parent=0 // pred_fallthru
    _
  // Predicated region
  $region30: #{householder_flow.1} parent=0 // pred_check
    _
  $region31: #{householder_flow.1} parent=0 // pred_check_branch
    %241 = sbr.rel (0) target = $region33
  $region32: #{householder_flow.1} parent=0 // pred_region
    _
  $region33: #{householder_flow.1} parent=0 // pred_fallthru
    _

</llo_original>
